<compile_context>
chip_gen: v6e
topology: v6e:2x2x1
jax: 0.10.0
libtpu: 0.0.40
codegen_flags: <defaults>
</compile_context>

<pallas_src>
import math
import functools

import jax
import jax.numpy as jnp
from jax import lax
from jax.experimental import pallas as pl
from jax.experimental.pallas import tpu as pltpu


def _round_up(a, b):
    return (a + b - 1) // b * b


def _apply_margin(label_cos, *, cos_m, sin_m, th, mm, easy_margin):
    """phi = cos(theta + m) with ArcFace easy/hard-margin fallback.

    Operates only on the (TILE_N, 1) label-cosine vector (target column)."""
    sine = jnp.sqrt(jnp.maximum(1.0 - label_cos * label_cos, 0.0))
    phi = label_cos * cos_m - sine * sin_m
    if easy_margin:
        return jnp.where(label_cos > 0.0, phi, label_cos)
    return jnp.where(label_cos > th, phi, label_cos - mm)


def arc_margin_kernel(x_ref, w_ref, lab_ref, loss_ref, corr_ref,
                      xn_ref, m_ref, l_ref, lc_ref, *,
                      cos_m, sin_m, th, mm, s, easy_margin,
                      tile_c, n_classes, padded_classes):
    k = pl.program_id(1)
    nk = pl.num_programs(1)

    @pl.when(k == 0)
    def _init():
        # Normalize x tile once per batch tile (rsqrt -> EUP, mul -> VPU),
        # cache as bf16 for the MXU; init online-softmax state.
        x = x_ref[...].astype(jnp.float32)
        inv_norm = lax.rsqrt(jnp.maximum(jnp.sum(x * x, axis=-1, keepdims=True),
                                         1e-24))      # == F.normalize(eps=1e-12)
        xn_ref[...] = (x * inv_norm).astype(jnp.bfloat16)
        m_ref[...] = jnp.full(m_ref.shape, -1e30, jnp.float32)   # running s*max(cos)
        l_ref[...] = jnp.zeros(l_ref.shape, jnp.float32)          # running sum-exp
        lc_ref[...] = jnp.zeros(lc_ref.shape, jnp.float32)        # running label cos

    # Cosine tile on the MXU: bf16 operands, f32 accumulation.
    cos = lax.dot_general(xn_ref[...], w_ref[...],
                          (((1,), (1,)), ((), ())),
                          preferred_element_type=jnp.float32)     # (TILE_N, TILE_C)

    col = k * tile_c + lax.broadcasted_iota(jnp.int32, cos.shape, 1)
    if padded_classes != n_classes:
        # Padded class columns: push below any real cosine (>= -1);
        # exp(s*(-1e4) - m) underflows to exactly 0 in the sum-exp.
        cos = jnp.where(col < n_classes, cos, -1e4)

    lab = lab_ref[...]                                            # (TILE_N, 1) int32

    # Exactly 3 full-row (XLU) reductions per tile: max, label pick, sum-exp.
    tile_max = jnp.max(cos, axis=-1, keepdims=True)               # (TILE_N, 1)
    lc_tile = jnp.sum(jnp.where(col == lab, cos, 0.0),
                      axis=-1, keepdims=True)                     # (TILE_N, 1)

    # Online logsumexp.  phi <= label_cos, so s*max(cos) is a valid stable
    # reference for every logit, including the margined target column.
    m_old = m_ref[...]
    m_new = jnp.maximum(m_old, s * tile_max)
    p = jnp.exp(s * cos - m_new)                                  # raw tile, no FMA
    tile_sum = jnp.sum(p, axis=-1, keepdims=True)

    # Per-row correction: swap exp(s*cos_label) for exp(s*phi) iff the label
    # column lives in this class tile (target-column-only ArcFace margin).
    in_tile = jnp.logical_and(lab >= k * tile_c, lab < k * tile_c + tile_c)
    phi = _apply_margin(lc_tile, cos_m=cos_m, sin_m=sin_m, th=th, mm=mm,
                        easy_margin=easy_margin)
    corr = jnp.where(in_tile,
                     jnp.exp(s * phi - m_new) - jnp.exp(s * lc_tile - m_new),
                     0.0)

    l_ref[...] = l_ref[...] * jnp.exp(m_old - m_new) + tile_sum + corr
    m_ref[...] = m_new
    lc_ref[...] = lc_ref[...] + lc_tile   # lc_tile is exactly 0 when not in tile

    @pl.when(k == nk - 1)
    def _finalize():
        lc = lc_ref[...]                                          # true label cosine
        phi_t = _apply_margin(lc, cos_m=cos_m, sin_m=sin_m, th=th, mm=mm,
                              easy_margin=easy_margin)
        lse = m_ref[...] + jnp.log(l_ref[...])                    # (TILE_N, 1)
        per_loss = lse - s * phi_t                                # CE per example
        # top-1 correct: label cosine attains the row max (m == s * max cosine).
        correct = (s * lc >= m_ref[...]).astype(jnp.float32)
        # Finalize-only tiny stores, once per batch tile.
        loss_ref[...] = per_loss[None]
        corr_ref[...] = correct[None]


def _est_vmem_bytes(tile_n, tile_c, emb, w_buffers):
    """Conservative VMEM footprint estimate for one TensorCore."""
    return (w_buffers * tile_c * emb * 2      # W tile(s), bf16
            + 2 * tile_n * emb * 4            # double-buffered x tile, f32
            + tile_n * emb * 2                # cached normalized x, bf16
            + 4 * tile_n * tile_c * 4         # live (tile_n, tile_c) f32 temps
            + (1 << 16))                      # stats / outputs / slack


def arc_margin_softmax_loss(x, W, labels, *, m=0.2, s=30.0, easy_margin=False,
                            tile_n=None, tile_c=None):
    """Returns (loss, acc1) matching ArcMarginSoftMaxLoss.forward."""
    N, E = x.shape
    C, E2 = W.shape
    assert E == E2

    # Hoisted W normalization (constant across all grid steps) + bf16 cast.
    Wf = W.astype(jnp.float32)
    w_n = (Wf * lax.rsqrt(jnp.maximum(jnp.sum(Wf * Wf, axis=-1, keepdims=True),
                                      1e-24))).astype(jnp.bfloat16)

    # Batch tile: as large as possible (MXU depth + fewer W re-streams); for
    # small N keep >= 2 batch tiles so the "parallel" axis can use both v7x TCs.
    if tile_n is None:
        if N >= 256:
            tile_n = 128
        elif N >= 32:
            tile_n = min(128, _round_up((N + 1) // 2, 16))
        else:
            tile_n = max(8, _round_up((N + 1) // 2, 8))

    # Class tile: fully VMEM-resident W when the whole working set fits a
    # conservative 24 MiB budget (safe on v7x's 64 MiB VMEM); otherwise stream
    # 1024-class tiles (multiple of 512 so the v5e 4x128 MXUs stay fed).
    if tile_c is None:
        c_full = _round_up(C, 128)
        if _est_vmem_bytes(tile_n, c_full, E, w_buffers=1) <= 24 * 2**20:
            tile_c = c_full
        else:
            tile_c = 1024

    c_pad = _round_up(C, tile_c)
    n_pad = _round_up(N, tile_n)
    nb, kc = n_pad // tile_n, c_pad // tile_c

    # No E padding: block last dim == full array dim is legal, and it removes
    # 25% of the streamed W bytes for emb_size=192.
    x_f = x.astype(jnp.float32)
    x_p = x_f if n_pad == N else jnp.zeros((n_pad, E), jnp.float32).at[:N].set(x_f)
    w_p = w_n if c_pad == C else jnp.zeros((c_pad, E), jnp.bfloat16).at[:C].set(w_n)
    lab = labels.astype(jnp.int32).reshape(N, 1)
    lab_p = lab if n_pad == N else jnp.zeros((n_pad, 1), jnp.int32).at[:N].set(lab)

    est = _est_vmem_bytes(tile_n, tile_c, E, w_buffers=1 if kc == 1 else 2)
    vmem_limit = int(max(32 * 2**20, min(56 * 2**20, 2 * est)))

    kernel = functools.partial(
        arc_margin_kernel,
        cos_m=math.cos(m), sin_m=math.sin(m),
        th=math.cos(math.pi - m), mm=math.sin(math.pi - m) * m,
        s=float(s), easy_margin=easy_margin,
        tile_c=tile_c, n_classes=C, padded_classes=c_pad)

    cost = pl.CostEstimate(
        flops=2 * n_pad * c_pad * E,
        transcendentals=n_pad * c_pad,
        bytes_accessed=(n_pad * E * 4
                        + (1 if kc == 1 else nb) * c_pad * E * 2
                        + n_pad * 8))

    loss_pe, corr_pe = pl.pallas_call(
        kernel,
        out_shape=(jax.ShapeDtypeStruct((nb, tile_n, 1), jnp.float32),
                   jax.ShapeDtypeStruct((nb, tile_n, 1), jnp.float32)),
        grid=(nb, kc),
        in_specs=[pl.BlockSpec((tile_n, E), lambda i, k: (i, 0)),
                  pl.BlockSpec((tile_c, E), lambda i, k: (k, 0)),
                  pl.BlockSpec((tile_n, 1), lambda i, k: (i, 0))],
        out_specs=(pl.BlockSpec((1, tile_n, 1), lambda i, k: (i, 0, 0)),
                   pl.BlockSpec((1, tile_n, 1), lambda i, k: (i, 0, 0))),
        scratch_shapes=[pltpu.VMEM((tile_n, E), jnp.bfloat16),  # cached x_n
                        pltpu.VMEM((tile_n, 1), jnp.float32),   # running max
                        pltpu.VMEM((tile_n, 1), jnp.float32),   # running sum-exp
                        pltpu.VMEM((tile_n, 1), jnp.float32)],  # running label cos
        compiler_params=pltpu.CompilerParams(
            dimension_semantics=("parallel", "arbitrary"),
            vmem_limit_bytes=vmem_limit),
        cost_estimate=cost,
    )(x_p, w_p, lab_p)

    per_loss = loss_pe.reshape(n_pad)[:N]
    correct = corr_pe.reshape(n_pad)[:N]
    return jnp.mean(per_loss), jnp.sum(correct).astype(jnp.int32)


def _reference(x, W, labels, *, m=0.2, s=30.0, easy_margin=False):
    """Pure-JAX f32 reference of the PyTorch forward."""
    cos_m, sin_m = math.cos(m), math.sin(m)
    th, mm = math.cos(math.pi - m), math.sin(math.pi - m) * m
    x_n = x / jnp.maximum(jnp.linalg.norm(x, axis=-1, keepdims=True), 1e-12)
    w_n = W / jnp.maximum(jnp.linalg.norm(W, axis=-1, keepdims=True), 1e-12)
    cosine = x_n @ w_n.T
    acc1 = jnp.sum(jnp.argmax(cosine, axis=1) == labels)
    sine = jnp.sqrt(jnp.maximum(1.0 - cosine * cosine, 0.0))
    phi = cosine * cos_m - sine * sin_m
    if easy_margin:
        phi = jnp.where(cosine > 0, phi, cosine)
    else:
        phi = jnp.where(cosine > th, phi, cosine - mm)
    one_hot = jax.nn.one_hot(labels, W.shape[0], dtype=cosine.dtype)
    logits = s * (one_hot * phi + (1.0 - one_hot) * cosine)
    lse = jax.scipy.special.logsumexp(logits, axis=-1)
    tgt = jnp.take_along_axis(logits, labels[:, None], axis=1)[:, 0]
    return jnp.mean(lse - tgt), acc1


if __name__ == "__main__":
    # Small shapes consistent with the module (emb_size=192 default; a small
    # stand-in for n_classes=5994 that still exercises class padding).
    N, E, C = 16, 192, 500

    key = jax.random.PRNGKey(0)
    kx, kw, kl = jax.random.split(key, 3)

    x = jax.random.normal(kx, (N, E), dtype=jnp.float32)
    # Deterministic xavier_uniform_-style init for W (C, E).
    bound = math.sqrt(6.0 / (E + C))
    W = jax.random.uniform(kw, (C, E), dtype=jnp.float32,
                           minval=-bound, maxval=bound)
    labels = jax.random.randint(kl, (N,), 0, C, dtype=jnp.int32)

    loss, acc1 = jax.jit(arc_margin_softmax_loss)(x, W, labels)
    jax.block_until_ready((loss, acc1))

    loss_ref, acc_ref = _reference(x, W, labels)
    assert jnp.allclose(loss, loss_ref, rtol=2e-2, atol=5e-2), (loss, loss_ref)
    assert int(acc1) == int(acc_ref), (acc1, acc_ref)
    print("KERNEL_OK")
</pallas_src>

<mosaic_0001>
module attributes {stable_mosaic.version = 11 : i64} {
  func.func @arc_margin_kernel(%arg0: i32, %arg1: i32, %arg2: memref<8x192xf32, #tpu.memory_space<vmem>>, %arg3: memref<512x192xbf16, #tpu.memory_space<vmem>>, %arg4: memref<8x1xi32, #tpu.memory_space<vmem>>, %arg5: memref<1x8x1xf32, #tpu.memory_space<vmem>>, %arg6: memref<1x8x1xf32, #tpu.memory_space<vmem>>, %arg7: memref<8x192xbf16, #tpu.memory_space<vmem>>, %arg8: memref<8x1xf32, #tpu.memory_space<vmem>>, %arg9: memref<8x1xf32, #tpu.memory_space<vmem>>, %arg10: memref<8x1xf32, #tpu.memory_space<vmem>>) attributes {dimension_semantics = [#tpu.dimension_semantics<parallel>, #tpu.dimension_semantics<arbitrary>], iteration_bounds = array<i64: 2, 1>, scalar_prefetch = 0 : i64, scratch_operands = 4 : i64, tpu.core_type = #tpu.core_type<tc>, window_params = [{transform_indices = @transform_0, window_bounds = array<i64: 8, 192>}, {transform_indices = @transform_1, window_bounds = array<i64: 512, 192>}, {transform_indices = @transform_2, window_bounds = array<i64: 8, 1>}, {transform_indices = @transform_3, window_bounds = array<i64: 1, 8, 1>}, {transform_indices = @transform_4, window_bounds = array<i64: 1, 8, 1>}]} {
    %c0_i32 = arith.constant 0 : i32
    %0 = arith.cmpi eq, %arg1, %c0_i32 : i32
    %1 = arith.extui %0 : i1 to i32
    %c0_i32_0 = arith.constant 0 : i32
    %2 = arith.cmpi ne, %1, %c0_i32_0 : i32
    scf.if %2 {
      %c0_39 = arith.constant 0 : index
      %c0_40 = arith.constant 0 : index
      %83 = vector.load %arg2[%c0_39, %c0_40] : memref<8x192xf32, #tpu.memory_space<vmem>>, vector<8x192xf32>
      %84 = arith.mulf %83, %83 : vector<8x192xf32>
      %cst_41 = arith.constant dense<0.000000e+00> : vector<8xf32>
      %85 = vector.multi_reduction <add>, %84, %cst_41 [1] : vector<8x192xf32> to vector<8xf32>
      %86 = vector.shape_cast %85 : vector<8xf32> to vector<8x1xf32>
      %cst_42 = arith.constant 1.000000e-24 : f32
      %87 = vector.broadcast %cst_42 : f32 to vector<8x1xf32>
      %88 = arith.maximumf %86, %87 : vector<8x1xf32>
      %89 = math.rsqrt %88 : vector<8x1xf32>
      %90 = vector.broadcast %89 : vector<8x1xf32> to vector<8x192xf32>
      %91 = arith.mulf %83, %90 : vector<8x192xf32>
      %92 = arith.truncf %91 : vector<8x192xf32> to vector<8x192xbf16>
      %c0_43 = arith.constant 0 : index
      %c0_44 = arith.constant 0 : index
      %93 = vector.load %arg7[%c0_43, %c0_44] : memref<8x192xbf16, #tpu.memory_space<vmem>>, vector<8x192xbf16>
      tpu.vector_store %arg7[%c0_43, %c0_44], %92 {strides = array<i32>} : memref<8x192xbf16, #tpu.memory_space<vmem>>, vector<8x192xbf16>,
      %cst_45 = arith.constant -1.000000e+30 : f32
      %94 = vector.broadcast %cst_45 : f32 to vector<8x1xf32>
      %c0_46 = arith.constant 0 : index
      %c0_47 = arith.constant 0 : index
      %95 = vector.load %arg8[%c0_46, %c0_47] : memref<8x1xf32, #tpu.memory_space<vmem>>, vector<8x1xf32>
      tpu.vector_store %arg8[%c0_46, %c0_47], %94 {strides = array<i32>} : memref<8x1xf32, #tpu.memory_space<vmem>>, vector<8x1xf32>,
      %cst_48 = arith.constant 0.000000e+00 : f32
      %96 = vector.broadcast %cst_48 : f32 to vector<8x1xf32>
      %c0_49 = arith.constant 0 : index
      %c0_50 = arith.constant 0 : index
      %97 = vector.load %arg9[%c0_49, %c0_50] : memref<8x1xf32, #tpu.memory_space<vmem>>, vector<8x1xf32>
      tpu.vector_store %arg9[%c0_49, %c0_50], %96 {strides = array<i32>} : memref<8x1xf32, #tpu.memory_space<vmem>>, vector<8x1xf32>,
      %cst_51 = arith.constant 0.000000e+00 : f32
      %98 = vector.broadcast %cst_51 : f32 to vector<8x1xf32>
      %c0_52 = arith.constant 0 : index
      %c0_53 = arith.constant 0 : index
      %99 = vector.load %arg10[%c0_52, %c0_53] : memref<8x1xf32, #tpu.memory_space<vmem>>, vector<8x1xf32>
      tpu.vector_store %arg10[%c0_52, %c0_53], %98 {strides = array<i32>} : memref<8x1xf32, #tpu.memory_space<vmem>>, vector<8x1xf32>,
    } else {
    }
    %c0 = arith.constant 0 : index
    %c0_1 = arith.constant 0 : index
    %3 = vector.load %arg7[%c0, %c0_1] : memref<8x192xbf16, #tpu.memory_space<vmem>>, vector<8x192xbf16>
    %c0_2 = arith.constant 0 : index
    %c0_3 = arith.constant 0 : index
    %4 = vector.load %arg3[%c0_2, %c0_3] : memref<512x192xbf16, #tpu.memory_space<vmem>>, vector<512x192xbf16>
    %cst = arith.constant dense<0.000000e+00> : vector<8x512xf32>
    %5 = tpu.matmul %3, %4, %cst {dimension_numbers = #tpu.dot_dimension_numbers<[1], [1], [0], [0], [0, 0, 1, 0], [], []>} : vector<8x192xbf16>, vector<512x192xbf16>, vector<8x512xf32> -> vector<8x512xf32>
    %c512_i32 = arith.constant 512 : i32
    %6 = arith.muli %arg1, %c512_i32 : i32
    %7 = tpu.iota {dimensions = array<i32: 1>} : vector<8x512xi32>
    %8 = vector.broadcast %6 : i32 to vector<8x512xi32>
    %9 = arith.addi %8, %7 : vector<8x512xi32>
    %c500_i32 = arith.constant 500 : i32
    %10 = vector.broadcast %c500_i32 : i32 to vector<8x512xi32>
    %11 = arith.cmpi slt, %9, %10 : vector<8x512xi32>
    %cst_4 = arith.constant -1.000000e+04 : f32
    %12 = vector.broadcast %cst_4 : f32 to vector<8x512xf32>
    %13 = arith.select %11, %5, %12 : vector<8x512xi1>, vector<8x512xf32>
    %c0_5 = arith.constant 0 : index
    %c0_6 = arith.constant 0 : index
    %14 = vector.load %arg4[%c0_5, %c0_6] : memref<8x1xi32, #tpu.memory_space<vmem>>, vector<8x1xi32>
    %cst_7 = arith.constant dense<0xFF800000> : vector<8xf32>
    %15 = vector.multi_reduction <maximumf>, %13, %cst_7 [1] : vector<8x512xf32> to vector<8xf32>
    %16 = vector.shape_cast %15 : vector<8xf32> to vector<8x1xf32>
    %17 = vector.broadcast %14 : vector<8x1xi32> to vector<8x512xi32>
    %18 = arith.cmpi eq, %9, %17 : vector<8x512xi32>
    %cst_8 = arith.constant 0.000000e+00 : f32
    %19 = vector.broadcast %cst_8 : f32 to vector<8x512xf32>
    %20 = arith.select %18, %13, %19 : vector<8x512xi1>, vector<8x512xf32>
    %cst_9 = arith.constant dense<0.000000e+00> : vector<8xf32>
    %21 = vector.multi_reduction <add>, %20, %cst_9 [1] : vector<8x512xf32> to vector<8xf32>
    %22 = vector.shape_cast %21 : vector<8xf32> to vector<8x1xf32>
    %c0_10 = arith.constant 0 : index
    %c0_11 = arith.constant 0 : index
    %23 = vector.load %arg8[%c0_10, %c0_11] : memref<8x1xf32, #tpu.memory_space<vmem>>, vector<8x1xf32>
    %cst_12 = arith.constant 3.000000e+01 : f32
    %24 = vector.broadcast %cst_12 : f32 to vector<8x1xf32>
    %25 = arith.mulf %24, %16 : vector<8x1xf32>
    %26 = arith.maximumf %23, %25 : vector<8x1xf32>
    %cst_13 = arith.constant 3.000000e+01 : f32
    %27 = vector.broadcast %cst_13 : f32 to vector<8x512xf32>
    %28 = arith.mulf %27, %13 : vector<8x512xf32>
    %29 = vector.broadcast %26 : vector<8x1xf32> to vector<8x512xf32>
    %30 = arith.subf %28, %29 : vector<8x512xf32>
    %31 = math.exp %30 : vector<8x512xf32>
    %cst_14 = arith.constant dense<0.000000e+00> : vector<8xf32>
    %32 = vector.multi_reduction <add>, %31, %cst_14 [1] : vector<8x512xf32> to vector<8xf32>
    %33 = vector.shape_cast %32 : vector<8xf32> to vector<8x1xf32>
    %c512_i32_15 = arith.constant 512 : i32
    %34 = arith.muli %arg1, %c512_i32_15 : i32
    %35 = vector.broadcast %34 : i32 to vector<8x1xi32>
    %36 = arith.cmpi sge, %14, %35 : vector<8x1xi32>
    %c512_i32_16 = arith.constant 512 : i32
    %37 = arith.muli %arg1, %c512_i32_16 : i32
    %c512_i32_17 = arith.constant 512 : i32
    %38 = arith.addi %37, %c512_i32_17 : i32
    %39 = vector.broadcast %38 : i32 to vector<8x1xi32>
    %40 = arith.cmpi slt, %14, %39 : vector<8x1xi32>
    %41 = arith.andi %36, %40 : vector<8x1xi1>
    %42 = arith.mulf %22, %22 : vector<8x1xf32>
    %cst_18 = arith.constant 1.000000e+00 : f32
    %43 = vector.broadcast %cst_18 : f32 to vector<8x1xf32>
    %44 = arith.subf %43, %42 : vector<8x1xf32>
    %cst_19 = arith.constant 0.000000e+00 : f32
    %45 = vector.broadcast %cst_19 : f32 to vector<8x1xf32>
    %46 = arith.maximumf %44, %45 : vector<8x1xf32>
    %47 = math.sqrt %46 : vector<8x1xf32>
    %cst_20 = arith.constant 0.980066597 : f32
    %48 = vector.broadcast %cst_20 : f32 to vector<8x1xf32>
    %49 = arith.mulf %22, %48 : vector<8x1xf32>
    %cst_21 = arith.constant 0.198669329 : f32
    %50 = vector.broadcast %cst_21 : f32 to vector<8x1xf32>
    %51 = arith.mulf %47, %50 : vector<8x1xf32>
    %52 = arith.subf %49, %51 : vector<8x1xf32>
    %cst_22 = arith.constant -0.980066597 : f32
    %53 = vector.broadcast %cst_22 : f32 to vector<8x1xf32>
    %54 = arith.cmpf ogt, %22, %53 : vector<8x1xf32>
    %cst_23 = arith.constant 0.0397338644 : f32
    %55 = vector.broadcast %cst_23 : f32 to vector<8x1xf32>
    %56 = arith.subf %22, %55 : vector<8x1xf32>
    %57 = arith.select %54, %52, %56 : vector<8x1xi1>, vector<8x1xf32>
    %cst_24 = arith.constant 3.000000e+01 : f32
    %58 = vector.broadcast %cst_24 : f32 to vector<8x1xf32>
    %59 = arith.mulf %58, %57 : vector<8x1xf32>
    %60 = arith.subf %59, %26 : vector<8x1xf32>
    %61 = math.exp %60 : vector<8x1xf32>
    %cst_25 = arith.constant 3.000000e+01 : f32
    %62 = vector.broadcast %cst_25 : f32 to vector<8x1xf32>
    %63 = arith.mulf %62, %22 : vector<8x1xf32>
    %64 = arith.subf %63, %26 : vector<8x1xf32>
    %65 = math.exp %64 : vector<8x1xf32>
    %66 = arith.subf %61, %65 : vector<8x1xf32>
    %cst_26 = arith.constant 0.000000e+00 : f32
    %67 = vector.broadcast %cst_26 : f32 to vector<8x1xf32>
    %68 = arith.select %41, %66, %67 : vector<8x1xi1>, vector<8x1xf32>
    %c0_27 = arith.constant 0 : index
    %c0_28 = arith.constant 0 : index
    %69 = vector.load %arg9[%c0_27, %c0_28] : memref<8x1xf32, #tpu.memory_space<vmem>>, vector<8x1xf32>
    %70 = arith.subf %23, %26 : vector<8x1xf32>
    %71 = math.exp %70 : vector<8x1xf32>
    %72 = arith.mulf %69, %71 : vector<8x1xf32>
    %73 = arith.addf %72, %33 : vector<8x1xf32>
    %74 = arith.addf %73, %68 : vector<8x1xf32>
    %c0_29 = arith.constant 0 : index
    %c0_30 = arith.constant 0 : index
    %75 = vector.load %arg9[%c0_29, %c0_30] : memref<8x1xf32, #tpu.memory_space<vmem>>, vector<8x1xf32>
    tpu.vector_store %arg9[%c0_29, %c0_30], %74 {strides = array<i32>} : memref<8x1xf32, #tpu.memory_space<vmem>>, vector<8x1xf32>,
    %c0_31 = arith.constant 0 : index
    %c0_32 = arith.constant 0 : index
    %76 = vector.load %arg8[%c0_31, %c0_32] : memref<8x1xf32, #tpu.memory_space<vmem>>, vector<8x1xf32>
    tpu.vector_store %arg8[%c0_31, %c0_32], %26 {strides = array<i32>} : memref<8x1xf32, #tpu.memory_space<vmem>>, vector<8x1xf32>,
    %c0_33 = arith.constant 0 : index
    %c0_34 = arith.constant 0 : index
    %77 = vector.load %arg10[%c0_33, %c0_34] : memref<8x1xf32, #tpu.memory_space<vmem>>, vector<8x1xf32>
    %78 = arith.addf %77, %22 : vector<8x1xf32>
    %c0_35 = arith.constant 0 : index
    %c0_36 = arith.constant 0 : index
    %79 = vector.load %arg10[%c0_35, %c0_36] : memref<8x1xf32, #tpu.memory_space<vmem>>, vector<8x1xf32>
    tpu.vector_store %arg10[%c0_35, %c0_36], %78 {strides = array<i32>} : memref<8x1xf32, #tpu.memory_space<vmem>>, vector<8x1xf32>,
    %c0_i32_37 = arith.constant 0 : i32
    %80 = arith.cmpi eq, %arg1, %c0_i32_37 : i32
    %81 = arith.extui %80 : i1 to i32
    %c0_i32_38 = arith.constant 0 : i32
    %82 = arith.cmpi ne, %81, %c0_i32_38 : i32
    scf.if %82 {
      %c0_39 = arith.constant 0 : index
      %c0_40 = arith.constant 0 : index
      %83 = vector.load %arg10[%c0_39, %c0_40] : memref<8x1xf32, #tpu.memory_space<vmem>>, vector<8x1xf32>
      %84 = arith.mulf %83, %83 : vector<8x1xf32>
      %cst_41 = arith.constant 1.000000e+00 : f32
      %85 = vector.broadcast %cst_41 : f32 to vector<8x1xf32>
      %86 = arith.subf %85, %84 : vector<8x1xf32>
      %cst_42 = arith.constant 0.000000e+00 : f32
      %87 = vector.broadcast %cst_42 : f32 to vector<8x1xf32>
      %88 = arith.maximumf %86, %87 : vector<8x1xf32>
      %89 = math.sqrt %88 : vector<8x1xf32>
      %cst_43 = arith.constant 0.980066597 : f32
      %90 = vector.broadcast %cst_43 : f32 to vector<8x1xf32>
      %91 = arith.mulf %83, %90 : vector<8x1xf32>
      %cst_44 = arith.constant 0.198669329 : f32
      %92 = vector.broadcast %cst_44 : f32 to vector<8x1xf32>
      %93 = arith.mulf %89, %92 : vector<8x1xf32>
      %94 = arith.subf %91, %93 : vector<8x1xf32>
      %cst_45 = arith.constant -0.980066597 : f32
      %95 = vector.broadcast %cst_45 : f32 to vector<8x1xf32>
      %96 = arith.cmpf ogt, %83, %95 : vector<8x1xf32>
      %cst_46 = arith.constant 0.0397338644 : f32
      %97 = vector.broadcast %cst_46 : f32 to vector<8x1xf32>
      %98 = arith.subf %83, %97 : vector<8x1xf32>
      %99 = arith.select %96, %94, %98 : vector<8x1xi1>, vector<8x1xf32>
      %c0_47 = arith.constant 0 : index
      %c0_48 = arith.constant 0 : index
      %100 = vector.load %arg8[%c0_47, %c0_48] : memref<8x1xf32, #tpu.memory_space<vmem>>, vector<8x1xf32>
      %c0_49 = arith.constant 0 : index
      %c0_50 = arith.constant 0 : index
      %101 = vector.load %arg9[%c0_49, %c0_50] : memref<8x1xf32, #tpu.memory_space<vmem>>, vector<8x1xf32>
      %102 = math.log %101 : vector<8x1xf32>
      %103 = arith.addf %100, %102 : vector<8x1xf32>
      %cst_51 = arith.constant 3.000000e+01 : f32
      %104 = vector.broadcast %cst_51 : f32 to vector<8x1xf32>
      %105 = arith.mulf %104, %99 : vector<8x1xf32>
      %106 = arith.subf %103, %105 : vector<8x1xf32>
      %cst_52 = arith.constant 3.000000e+01 : f32
      %107 = vector.broadcast %cst_52 : f32 to vector<8x1xf32>
      %108 = arith.mulf %107, %83 : vector<8x1xf32>
      %c0_53 = arith.constant 0 : index
      %c0_54 = arith.constant 0 : index
      %109 = vector.load %arg8[%c0_53, %c0_54] : memref<8x1xf32, #tpu.memory_space<vmem>>, vector<8x1xf32>
      %110 = arith.cmpf oge, %108, %109 : vector<8x1xf32>
      %111 = arith.extui %110 : vector<8x1xi1> to vector<8x1xi32>
      %112 = arith.sitofp %111 : vector<8x1xi32> to vector<8x1xf32>
      %113 = vector.shape_cast %106 : vector<8x1xf32> to vector<1x8x1xf32>
      %c0_55 = arith.constant 0 : index
      %c0_56 = arith.constant 0 : index
      %c0_57 = arith.constant 0 : index
      %114 = vector.load %arg5[%c0_55, %c0_56, %c0_57] : memref<1x8x1xf32, #tpu.memory_space<vmem>>, vector<1x8x1xf32>
      tpu.vector_store %arg5[%c0_55, %c0_56, %c0_57], %113 {strides = array<i32>} : memref<1x8x1xf32, #tpu.memory_space<vmem>>, vector<1x8x1xf32>,
      %115 = vector.shape_cast %112 : vector<8x1xf32> to vector<1x8x1xf32>
      %c0_58 = arith.constant 0 : index
      %c0_59 = arith.constant 0 : index
      %c0_60 = arith.constant 0 : index
      %116 = vector.load %arg6[%c0_58, %c0_59, %c0_60] : memref<1x8x1xf32, #tpu.memory_space<vmem>>, vector<1x8x1xf32>
      tpu.vector_store %arg6[%c0_58, %c0_59, %c0_60], %115 {strides = array<i32>} : memref<1x8x1xf32, #tpu.memory_space<vmem>>, vector<1x8x1xf32>,
    } else {
    }
    return
  }
  func.func @transform_0(%arg0: i32, %arg1: i32) -> (i32, i32) {
    %c0_i32 = arith.constant 0 : i32
    %c0_i32_0 = arith.constant 0 : i32
    return %arg0, %c0_i32 : i32, i32
  }
  func.func @transform_1(%arg0: i32, %arg1: i32) -> (i32, i32) {
    %c0_i32 = arith.constant 0 : i32
    %c0_i32_0 = arith.constant 0 : i32
    return %arg1, %c0_i32 : i32, i32
  }
  func.func @transform_2(%arg0: i32, %arg1: i32) -> (i32, i32) {
    %c0_i32 = arith.constant 0 : i32
    %c0_i32_0 = arith.constant 0 : i32
    return %arg0, %c0_i32 : i32, i32
  }
  func.func @transform_3(%arg0: i32, %arg1: i32) -> (i32, i32, i32) {
    %c0_i32 = arith.constant 0 : i32
    %c0_i32_0 = arith.constant 0 : i32
    %c0_i32_1 = arith.constant 0 : i32
    return %arg0, %c0_i32, %c0_i32_0 : i32, i32, i32
  }
  func.func @transform_4(%arg0: i32, %arg1: i32) -> (i32, i32, i32) {
    %c0_i32 = arith.constant 0 : i32
    %c0_i32_0 = arith.constant 0 : i32
    %c0_i32_1 = arith.constant 0 : i32
    return %arg0, %c0_i32, %c0_i32_0 : i32, i32, i32
  }
}

</mosaic_0001>

<llo_original>
// kernel: arc_margin_softmax_loss.1
$region0: #{arc_margin_softmax_loss.1}
  #allocation0 [shape = 'u32[]', space=smem, size = 0x4, offset = 0x4, fixed_abs, tag = 'smem constant byte address 0x4 - core index']
  #allocation1 [shape = 'u32[144,128]{1,0:T(1,128)}', space=vmem, size = 0x12000, scoped, tag = 'internal scratch']
  #allocation2 [shape = 'bf16[8,192]{1,0:T(8,128)(2,1)}', space=vmem, size = 0x1000, scoped, tag = 'scratch operand']
  #allocation3 [shape = 'f32[8,1]{1,0:T(8,128)}', space=vmem, size = 0x1000, scoped, tag = 'scratch operand']
  #allocation4 [shape = 'f32[8,1]{1,0:T(8,128)}', space=vmem, size = 0x1000, scoped, tag = 'scratch operand']
  #allocation5 [shape = 'f32[8,1]{1,0:T(8,128)}', space=vmem, size = 0x1000, scoped, tag = 'scratch operand']
  %s0 = inlined_call_operand.vmem [shape: f32[16,192], index: 0, kind: input, shape index: {}]
  %s1 = inlined_call_operand.vmem [shape: bf16[512,192], index: 1, kind: input, shape index: {}]
  %s2 = inlined_call_operand.vmem [shape: s32[16,1], index: 2, kind: input, shape index: {}]
  %s3 = inlined_call_operand.vmem [shape: f32[2,8,1], index: 3, kind: output, shape index: {0}]
  %s4 = inlined_call_operand.vmem [shape: f32[2,8,1], index: 4, kind: output, shape index: {1}]
  %5 = xla_tuple %s3, %s4
  %s6 = sld [smem:[#allocation0]]
  $region61: #{arc_margin_softmax_loss.1} parent=0
    _
  %s8 = ssub.s32 1, %s6
  %s9 = scalar_select 0, %s8, %s6
  loop: start=0, step=1, limit=4
  $region2: #{arc_margin_softmax_loss.1} parent=0 // loop_pre_header
    _
  $region3: #{arc_margin_softmax_loss.1} parent=0 // loop_header
    %s11 = sphi 0, %s15
    %p12 = scmp.ge.s32.totalorder %s11, 4
    %s18 = sphi 0, %s30
    %s19 = sphi 0, %s26
    %s20 = sphi 0, %s18
    %s21 = sphi 0, %s19
    %s22 = sphi 0, %s20
    %s23 = sphi 0, %s21
    %s33 = sphi 0, %s35
    %s36 = sphi 0, %s33
    %s37 = sphi 0, %s36
    %s53 = sphi 0, %s37
    %s59 = sphi 0, %s61
    %s62 = sphi 0, %s59
    %s63 = sphi 0, %s62
    %s79 = sphi 0, %s63
    %s85 = sphi 0, %s87
    %s88 = sphi 0, %s85
    %s89 = sphi 0, %s88
    %s105 = sphi 0, %s89
    %s111 = sphi 0, %s113
    %s114 = sphi 0, %s111
    %s115 = sphi 0, %s114
    %s131 = sphi 0, %s115
    %s137 = sphi 0, %s139
    %s140 = sphi 0, %s137
    %s141 = sphi 0, %s140
    %s157 = sphi 0, %s141
  $region4: #{arc_margin_softmax_loss.1} parent=0 // loop_header_branch
    %14 = sbr.rel (%p12) target = $region8
  $region5: #{arc_margin_softmax_loss.1} parent=0 // loop_body
    %s16 = ssub.s32 %s11, 1
    %s17 = ssub.s32 %s11, 2
    %s24 = sadd.s32 1, %s19
    %p25 = scmp.ge.s32.totalorder %s24, 1
    %s26 = scalar_select %p25, 0, %s24
    %s27 = sadd.s32 1, %s18
    %s28 = scalar_select %p25, %s27, %s18
    %p29 = scmp.ge.s32.totalorder %s28, 2
    %s30 = scalar_select %p29, 0, %s28
    %s31 = ssub.s32 %s18, %s30
    %p32 = scmp.eq.s32.totalorder %s31, 0
    %s34 = sadd.s32 %s33, 1
    %s35 = scalar_select %p32, %s33, %s34
    %p38 = pneg %p32
    %p39 = scmp.eq.s32.totalorder %s11, 1
    %p40 = por %p38, %p39
    %p41 = scmp.ne.s32.totalorder %s33, %s36
    %p42 = scmp.eq.s32.totalorder %s11, 0
    %p43 = por %p41, %p42
    %p44 = scmp.ne.s32.totalorder %s33, %s36
    %p45 = scmp.eq.s32.totalorder %s16, 1
    %p46 = por %p44, %p45
    %p47 = scmp.ne.s32.totalorder %s36, %s37
    %p48 = scmp.eq.s32.totalorder %s16, 0
    %p49 = por %p47, %p48
    %p50 = scmp.ne.s32.totalorder %s36, %s37
    %p51 = scmp.eq.s32.totalorder %s17, 1
    %p52 = por %p50, %p51
    %p54 = scmp.ne.s32.totalorder %s37, %s53
    %p55 = scmp.eq.s32.totalorder %s17, 0
    %p56 = por %p54, %p55
    %s57 = ssub.s32 %s19, %s26
    %p58 = scmp.eq.s32.totalorder %s57, 0
    %s60 = sadd.s32 %s59, 1
    %s61 = scalar_select %p58, %s59, %s60
    %p64 = pneg %p58
    %p65 = scmp.eq.s32.totalorder %s11, 1
    %p66 = por %p64, %p65
    %p67 = scmp.ne.s32.totalorder %s59, %s62
    %p68 = scmp.eq.s32.totalorder %s11, 0
    %p69 = por %p67, %p68
    %p70 = scmp.ne.s32.totalorder %s59, %s62
    %p71 = scmp.eq.s32.totalorder %s16, 1
    %p72 = por %p70, %p71
    %p73 = scmp.ne.s32.totalorder %s62, %s63
    %p74 = scmp.eq.s32.totalorder %s16, 0
    %p75 = por %p73, %p74
    %p76 = scmp.ne.s32.totalorder %s62, %s63
    %p77 = scmp.eq.s32.totalorder %s17, 1
    %p78 = por %p76, %p77
    %p80 = scmp.ne.s32.totalorder %s63, %s79
    %p81 = scmp.eq.s32.totalorder %s17, 0
    %p82 = por %p80, %p81
    %s83 = ssub.s32 %s18, %s30
    %p84 = scmp.eq.s32.totalorder %s83, 0
    %s86 = sadd.s32 %s85, 1
    %s87 = scalar_select %p84, %s85, %s86
    %p90 = pneg %p84
    %p91 = scmp.eq.s32.totalorder %s11, 1
    %p92 = por %p90, %p91
    %p93 = scmp.ne.s32.totalorder %s85, %s88
    %p94 = scmp.eq.s32.totalorder %s11, 0
    %p95 = por %p93, %p94
    %p96 = scmp.ne.s32.totalorder %s85, %s88
    %p97 = scmp.eq.s32.totalorder %s16, 1
    %p98 = por %p96, %p97
    %p99 = scmp.ne.s32.totalorder %s88, %s89
    %p100 = scmp.eq.s32.totalorder %s16, 0
    %p101 = por %p99, %p100
    %p102 = scmp.ne.s32.totalorder %s88, %s89
    %p103 = scmp.eq.s32.totalorder %s17, 1
    %p104 = por %p102, %p103
    %p106 = scmp.ne.s32.totalorder %s89, %s105
    %p107 = scmp.eq.s32.totalorder %s17, 0
    %p108 = por %p106, %p107
    %s109 = ssub.s32 %s18, %s30
    %p110 = scmp.eq.s32.totalorder %s109, 0
    %s112 = sadd.s32 %s111, 1
    %s113 = scalar_select %p110, %s111, %s112
    %p116 = pneg %p110
    %p117 = scmp.eq.s32.totalorder %s11, 1
    %p118 = por %p116, %p117
    %p119 = scmp.ne.s32.totalorder %s111, %s114
    %p120 = scmp.eq.s32.totalorder %s11, 0
    %p121 = por %p119, %p120
    %p122 = scmp.ne.s32.totalorder %s111, %s114
    %p123 = scmp.eq.s32.totalorder %s16, 1
    %p124 = por %p122, %p123
    %p125 = scmp.ne.s32.totalorder %s114, %s115
    %p126 = scmp.eq.s32.totalorder %s16, 0
    %p127 = por %p125, %p126
    %p128 = scmp.ne.s32.totalorder %s114, %s115
    %p129 = scmp.eq.s32.totalorder %s17, 1
    %p130 = por %p128, %p129
    %p132 = scmp.ne.s32.totalorder %s115, %s131
    %p133 = scmp.eq.s32.totalorder %s17, 0
    %p134 = por %p132, %p133
    %s135 = ssub.s32 %s18, %s30
    %p136 = scmp.eq.s32.totalorder %s135, 0
    %s138 = sadd.s32 %s137, 1
    %s139 = scalar_select %p136, %s137, %s138
    %p142 = pneg %p136
    %p143 = scmp.eq.s32.totalorder %s11, 1
    %p144 = por %p142, %p143
    %p145 = scmp.ne.s32.totalorder %s137, %s140
    %p146 = scmp.eq.s32.totalorder %s11, 0
    %p147 = por %p145, %p146
    %p148 = scmp.ne.s32.totalorder %s137, %s140
    %p149 = scmp.eq.s32.totalorder %s16, 1
    %p150 = por %p148, %p149
    %p151 = scmp.ne.s32.totalorder %s140, %s141
    %p152 = scmp.eq.s32.totalorder %s16, 0
    %p153 = por %p151, %p152
    %p154 = scmp.ne.s32.totalorder %s140, %s141
    %p155 = scmp.eq.s32.totalorder %s17, 1
    %p156 = por %p154, %p155
    %p158 = scmp.ne.s32.totalorder %s141, %s157
    %p159 = scmp.eq.s32.totalorder %s17, 0
    %p160 = por %p158, %p159
    %p161 = scmp.le.s32.totalorder 1, %s11
    %p162 = scmp.lt.s32.totalorder %s11, 3
    %p163 = pnand %p161, %p162
    %p164 = pneg %p163
    // Predicated region
    $region9: #{arc_margin_softmax_loss.1} parent=5 // pred_check
      _
    $region10: #{arc_margin_softmax_loss.1} parent=5 // pred_check_branch
      %166 = sbr.rel (%p163) target = $region12
    $region11: #{arc_margin_softmax_loss.1} parent=5 // pred_region
      %s167 = ssub.s32 %s11, 1
      // Predicated region
      $region13: #{arc_margin_softmax_loss.1} parent=11 // pred_check
        %p168 = pneg %p75
      $region14: #{arc_margin_softmax_loss.1} parent=11 // pred_check_branch
        %170 = sbr.rel (%p168) target = $region16
      $region15: #{arc_margin_softmax_loss.1} parent=11 // pred_region
        %s171 = smul.u32 64, %s21
        %p172 = scmp.lt.s32.totalorder %s171, 63
        %s173 = scalar_select %p172, %s171, 63
        %s174 = smul.addr %s173, 2
        %s175 = smul.addr %s174, 4
        %s176 = scalar_lea.vmem %s1, %s175
        %s177 = smul.u32 64, %s21
      $region16: #{arc_margin_softmax_loss.1} parent=11 // pred_fallthru
        _
    $region12: #{arc_margin_softmax_loss.1} parent=5 // pred_fallthru
      _
    %p178 = scmp.lt.s32.totalorder %s11, 2
    // Predicated region
    $region17: #{arc_margin_softmax_loss.1} parent=5 // pred_check
      %p179 = pneg %p178
    $region18: #{arc_margin_softmax_loss.1} parent=5 // pred_check_branch
      %181 = sbr.rel (%p179) target = $region20
    $region19: #{arc_margin_softmax_loss.1} parent=5 // pred_region
      // Predicated region
      $region21: #{arc_margin_softmax_loss.1} parent=19 // pred_check
        %p182 = pneg %p43
      $region22: #{arc_margin_softmax_loss.1} parent=19 // pred_check_branch
        %184 = sbr.rel (%p182) target = $region24
      $region23: #{arc_margin_softmax_loss.1} parent=19 // pred_region
        %p185 = scmp.lt.s32.totalorder %s18, 1
        %s186 = scalar_select %p185, %s18, 1
        %s187 = smul.addr %s186, 2
        %s188 = smul.addr %s187, 8
        %s189 = scalar_lea.vmem %s0, %s188
      $region24: #{arc_margin_softmax_loss.1} parent=19 // pred_fallthru
        _
      // Predicated region
      $region25: #{arc_margin_softmax_loss.1} parent=19 // pred_check
        %p190 = pneg %p95
      $region26: #{arc_margin_softmax_loss.1} parent=19 // pred_check_branch
        %192 = sbr.rel (%p190) target = $region28
      $region27: #{arc_margin_softmax_loss.1} parent=19 // pred_region
        %p193 = scmp.lt.s32.totalorder %s18, 1
        %s194 = scalar_select %p193, %s18, 1
        %s195 = smul.addr %s194, 8
        %s196 = scalar_lea.vmem %s2, %s195
      $region28: #{arc_margin_softmax_loss.1} parent=19 // pred_fallthru
        _
    $region20: #{arc_margin_softmax_loss.1} parent=5 // pred_fallthru
      _
    %p197 = scmp.le.s32.totalorder 1, %s11
    %p198 = scmp.lt.s32.totalorder %s11, 3
    %p199 = pnand %p197, %p198
    %p200 = pneg %p199
    // Predicated region
    $region29: #{arc_margin_softmax_loss.1} parent=5 // pred_check
      _
    $region30: #{arc_margin_softmax_loss.1} parent=5 // pred_check_branch
      %202 = sbr.rel (%p199) target = $region32
    $region31: #{arc_margin_softmax_loss.1} parent=5 // pred_region
      %s203 = ssub.s32 %s11, 1
      %p204 = scmp.lt.s32.totalorder %s20, 1
      %s205 = scalar_select %p204, %s20, 1
      %s206 = smul.addr %s205, 2
      %s207 = smul.addr %s206, 8
      %s208 = scalar_lea.vmem %s0, %s207
      %p209 = pneg %p49
      %p210 = pneg %p46
      %s211 = smul.u32 64, %s21
      %p212 = scmp.lt.s32.totalorder %s211, 63
      %s213 = scalar_select %p212, %s211, 63
      %s214 = smul.addr %s213, 2
      %s215 = smul.addr %s214, 4
      %s216 = scalar_lea.vmem %s1, %s215
      %p217 = pneg %p75
      %p218 = pneg %p72
      %p219 = scmp.lt.s32.totalorder %s20, 1
      %s220 = scalar_select %p219, %s20, 1
      %s221 = smul.addr %s220, 8
      %s222 = scalar_lea.vmem %s2, %s221
      %p223 = pneg %p101
      %p224 = pneg %p98
      %p225 = pneg %p127
      %p226 = pneg %p124
      %p227 = scmp.lt.s32.totalorder %s20, 1
      %s228 = scalar_select %p227, %s20, 1
      %s229 = smul.addr %s228, 8
      %s230 = scalar_lea.vmem %s3, %s229
      %p231 = pneg %p153
      %p232 = pneg %p150
      %p233 = scmp.lt.s32.totalorder %s20, 1
      %s234 = scalar_select %p233, %s20, 1
      %s235 = smul.addr %s234, 8
      %s236 = scalar_lea.vmem %s4, %s235
      %p237 = scmp.lt.s32.totalorder %s20, 1
      %s238 = scalar_select %p237, %s20, 1
      %s239 = smul.addr %s238, 2
      %s240 = smul.addr %s239, 8
      %s241 = scalar_lea.vmem %s0, %s240
      %s242 = smul.u32 64, %s21
      %p243 = scmp.lt.s32.totalorder %s242, 63
      %s244 = scalar_select %p243, %s242, 63
      %s245 = smul.addr %s244, 2
      %s246 = smul.addr %s245, 4
      %s247 = scalar_lea.vmem %s1, %s246
      %s248 = smul.u32 64, %s21
      %p249 = scmp.lt.s32.totalorder %s20, 1
      %s250 = scalar_select %p249, %s20, 1
      %s251 = smul.addr %s250, 8
      %s252 = scalar_lea.vmem %s2, %s251
      %p253 = scmp.lt.s32.totalorder %s20, 1
      %s254 = scalar_select %p253, %s20, 1
      %s255 = smul.addr %s254, 8
      %s256 = scalar_lea.vmem %s3, %s255
      %p257 = scmp.lt.s32.totalorder %s20, 1
      %s258 = scalar_select %p257, %s20, 1
      %s259 = smul.addr %s258, 8
      %s260 = scalar_lea.vmem %s4, %s259
      %p261 = scmp.eq.s32.totalorder %s21, 0
      // Predicated region
      $region33: #{arc_margin_softmax_loss.1} parent=31 // pred_check
        %p262 = pneg %p261
      $region34: #{arc_margin_softmax_loss.1} parent=31 // pred_check_branch
        %264 = sbr.rel (%p262) target = $region36
      $region35: #{arc_margin_softmax_loss.1} parent=31 // pred_region
        %v265 = vld [vmem:[%s241] sm:$0xff]
        %v266 = vld [vmem:[%s241 + $0x8] sm:$0xff]
        %v267 = vmul.f32 %v265, %v265
        %v268 = vmul.f32 %v266, %v266
        %vm269 = vcmask 523264
        %v270 = vsel %vm269, %v268, 0.0
        %v271 = vadd.f32 %v267, %v270
        %272 = vadd.xlane.f32.xlu0 %v271
        %v273 = vpop.xlane.xlu0 %272
        %v274 = vmax.f32 %v273, 1e-24
        %v275 = vrsqrt.pop %v274
        %v276 = vmul.f32 %v265, %v275
        %v277 = vmul.f32 %v266, %v275
        %v278 = vpack.c.bf16 %v276, %v276
        %v279 = vpack.c.bf16 %v277, %v277
        %v282 = vunpack.c.l.b16 %v278
        %v283 = vunpack.c.l.b16 %v279
        %v284 = vpack.c.b16 %v283, %v282
        %vm286 = vcmask 1043456
        %vm287 = vcmask 523268
        %vm288 = vmor %vm287, %vm286
        %289 = vst.msk [vmem:[#allocation2] sm:$0xff] %vm288, %v284
        %vm290 = vcmask 7168
        %291 = vst.msk [vmem:[#allocation3] sm:$0xff] %vm290, -1e+30
        %292 = vst.msk [vmem:[#allocation4] sm:$0xff] %vm290, 0.0
        %293 = vst.msk [vmem:[#allocation5] sm:$0xff] %vm290, 0.0
      $region36: #{arc_margin_softmax_loss.1} parent=31 // pred_fallthru
        _
      %v294 = vld [vmem:[#allocation2] sm:$0xff]
      %v295 = vld [vmem:[%s247] sm:$0xff]
      %v296 = vld [vmem:[%s247 + $0x8] sm:$0xff]
      %v297 = vld [vmem:[%s247 + $0x10] sm:$0xff]
      %v298 = vld [vmem:[%s247 + $0x18] sm:$0xff]
      %v299 = vld [vmem:[%s247 + $0x20] sm:$0xff]
      %v300 = vld [vmem:[%s247 + $0x28] sm:$0xff]
      %v301 = vld [vmem:[%s247 + $0x30] sm:$0xff]
      %v302 = vld [vmem:[%s247 + $0x38] sm:$0xff]
      %v303 = vld [vmem:[%s247 + $0x40] sm:$0xff]
      %v304 = vld [vmem:[%s247 + $0x48] sm:$0xff]
      %v305 = vld [vmem:[%s247 + $0x50] sm:$0xff]
      %v306 = vld [vmem:[%s247 + $0x58] sm:$0xff]
      %v307 = vld [vmem:[%s247 + $0x60] sm:$0xff]
      %v308 = vld [vmem:[%s247 + $0x68] sm:$0xff]
      %v309 = vld [vmem:[%s247 + $0x70] sm:$0xff]
      %v310 = vld [vmem:[%s247 + $0x78] sm:$0xff]
      %v311 = vld [vmem:[%s247 + $0x80] sm:$0xff]
      %v312 = vld [vmem:[%s247 + $0x88] sm:$0xff]
      %v313 = vld [vmem:[%s247 + $0x90] sm:$0xff]
      %v314 = vld [vmem:[%s247 + $0x98] sm:$0xff]
      %v315 = vld [vmem:[%s247 + $0xa0] sm:$0xff]
      %v316 = vld [vmem:[%s247 + $0xa8] sm:$0xff]
      %v317 = vld [vmem:[%s247 + $0xb0] sm:$0xff]
      %v318 = vld [vmem:[%s247 + $0xb8] sm:$0xff]
      %v319 = vld [vmem:[%s247 + $0xc0] sm:$0xff]
      %v320 = vld [vmem:[%s247 + $0xc8] sm:$0xff]
      %v321 = vld [vmem:[%s247 + $0xd0] sm:$0xff]
      %v322 = vld [vmem:[%s247 + $0xd8] sm:$0xff]
      %v323 = vld [vmem:[%s247 + $0xe0] sm:$0xff]
      %v324 = vld [vmem:[%s247 + $0xe8] sm:$0xff]
      %v325 = vld [vmem:[%s247 + $0xf0] sm:$0xff]
      %v326 = vld [vmem:[%s247 + $0xf8] sm:$0xff]
      %v327 = vld [vmem:[%s247 + $0x100] sm:$0xff]
      %v328 = vld [vmem:[%s247 + $0x108] sm:$0xff]
      %v329 = vld [vmem:[%s247 + $0x110] sm:$0xff]
      %v330 = vld [vmem:[%s247 + $0x118] sm:$0xff]
      %v331 = vld [vmem:[%s247 + $0x120] sm:$0xff]
      %v332 = vld [vmem:[%s247 + $0x128] sm:$0xff]
      %v333 = vld [vmem:[%s247 + $0x130] sm:$0xff]
      %v334 = vld [vmem:[%s247 + $0x138] sm:$0xff]
      %v335 = vld [vmem:[%s247 + $0x140] sm:$0xff]
      %v336 = vld [vmem:[%s247 + $0x148] sm:$0xff]
      %v337 = vld [vmem:[%s247 + $0x150] sm:$0xff]
      %v338 = vld [vmem:[%s247 + $0x158] sm:$0xff]
      %v339 = vld [vmem:[%s247 + $0x160] sm:$0xff]
      %v340 = vld [vmem:[%s247 + $0x168] sm:$0xff]
      %v341 = vld [vmem:[%s247 + $0x170] sm:$0xff]
      %v342 = vld [vmem:[%s247 + $0x178] sm:$0xff]
      %v343 = vld [vmem:[%s247 + $0x180] sm:$0xff]
      %v344 = vld [vmem:[%s247 + $0x188] sm:$0xff]
      %v345 = vld [vmem:[%s247 + $0x190] sm:$0xff]
      %v346 = vld [vmem:[%s247 + $0x198] sm:$0xff]
      %v347 = vld [vmem:[%s247 + $0x1a0] sm:$0xff]
      %v348 = vld [vmem:[%s247 + $0x1a8] sm:$0xff]
      %v349 = vld [vmem:[%s247 + $0x1b0] sm:$0xff]
      %v350 = vld [vmem:[%s247 + $0x1b8] sm:$0xff]
      %v351 = vld [vmem:[%s247 + $0x1c0] sm:$0xff]
      %v352 = vld [vmem:[%s247 + $0x1c8] sm:$0xff]
      %v353 = vld [vmem:[%s247 + $0x1d0] sm:$0xff]
      %v354 = vld [vmem:[%s247 + $0x1d8] sm:$0xff]
      %v355 = vld [vmem:[%s247 + $0x1e0] sm:$0xff]
      %v356 = vld [vmem:[%s247 + $0x1e8] sm:$0xff]
      %v357 = vld [vmem:[%s247 + $0x1f0] sm:$0xff]
      %v358 = vld [vmem:[%s247 + $0x1f8] sm:$0xff]
      %v360 = vunpack.c.l.b16 %v294
      %v361 = vunpack.c.h.b16 %v294
      %v362 = vpack.c.b16 %v360, %v360
      %v363 = vpack.c.b16 %v361, %v361
      %v429 = vunpack.c.l.b16 %v295
      %v430 = vunpack.c.h.b16 %v295
      %v431 = vunpack.c.l.b16 %v296
      %v432 = vunpack.c.h.b16 %v296
      %v433 = vunpack.c.l.b16 %v297
      %v434 = vunpack.c.h.b16 %v297
      %v435 = vunpack.c.l.b16 %v298
      %v436 = vunpack.c.h.b16 %v298
      %v437 = vunpack.c.l.b16 %v299
      %v438 = vunpack.c.h.b16 %v299
      %v439 = vunpack.c.l.b16 %v300
      %v440 = vunpack.c.h.b16 %v300
      %v441 = vunpack.c.l.b16 %v301
      %v442 = vunpack.c.h.b16 %v301
      %v443 = vunpack.c.l.b16 %v302
      %v444 = vunpack.c.h.b16 %v302
      %v445 = vunpack.c.l.b16 %v303
      %v446 = vunpack.c.h.b16 %v303
      %v447 = vunpack.c.l.b16 %v304
      %v448 = vunpack.c.h.b16 %v304
      %v449 = vunpack.c.l.b16 %v305
      %v450 = vunpack.c.h.b16 %v305
      %v451 = vunpack.c.l.b16 %v306
      %v452 = vunpack.c.h.b16 %v306
      %v453 = vunpack.c.l.b16 %v307
      %v454 = vunpack.c.h.b16 %v307
      %v455 = vunpack.c.l.b16 %v308
      %v456 = vunpack.c.h.b16 %v308
      %v457 = vunpack.c.l.b16 %v309
      %v458 = vunpack.c.h.b16 %v309
      %v459 = vunpack.c.l.b16 %v310
      %v460 = vunpack.c.h.b16 %v310
      %v461 = vunpack.c.l.b16 %v311
      %v462 = vunpack.c.h.b16 %v311
      %v463 = vunpack.c.l.b16 %v312
      %v464 = vunpack.c.h.b16 %v312
      %v465 = vunpack.c.l.b16 %v313
      %v466 = vunpack.c.h.b16 %v313
      %v467 = vunpack.c.l.b16 %v314
      %v468 = vunpack.c.h.b16 %v314
      %v469 = vunpack.c.l.b16 %v315
      %v470 = vunpack.c.h.b16 %v315
      %v471 = vunpack.c.l.b16 %v316
      %v472 = vunpack.c.h.b16 %v316
      %v473 = vunpack.c.l.b16 %v317
      %v474 = vunpack.c.h.b16 %v317
      %v475 = vunpack.c.l.b16 %v318
      %v476 = vunpack.c.h.b16 %v318
      %v477 = vunpack.c.l.b16 %v319
      %v478 = vunpack.c.h.b16 %v319
      %v479 = vunpack.c.l.b16 %v320
      %v480 = vunpack.c.h.b16 %v320
      %v481 = vunpack.c.l.b16 %v321
      %v482 = vunpack.c.h.b16 %v321
      %v483 = vunpack.c.l.b16 %v322
      %v484 = vunpack.c.h.b16 %v322
      %v485 = vunpack.c.l.b16 %v323
      %v486 = vunpack.c.h.b16 %v323
      %v487 = vunpack.c.l.b16 %v324
      %v488 = vunpack.c.h.b16 %v324
      %v489 = vunpack.c.l.b16 %v325
      %v490 = vunpack.c.h.b16 %v325
      %v491 = vunpack.c.l.b16 %v326
      %v492 = vunpack.c.h.b16 %v326
      %v493 = vunpack.c.l.b16 %v327
      %v494 = vunpack.c.h.b16 %v327
      %v495 = vunpack.c.l.b16 %v328
      %v496 = vunpack.c.h.b16 %v328
      %v497 = vunpack.c.l.b16 %v329
      %v498 = vunpack.c.h.b16 %v329
      %v499 = vunpack.c.l.b16 %v330
      %v500 = vunpack.c.h.b16 %v330
      %v501 = vunpack.c.l.b16 %v331
      %v502 = vunpack.c.h.b16 %v331
      %v503 = vunpack.c.l.b16 %v332
      %v504 = vunpack.c.h.b16 %v332
      %v505 = vunpack.c.l.b16 %v333
      %v506 = vunpack.c.h.b16 %v333
      %v507 = vunpack.c.l.b16 %v334
      %v508 = vunpack.c.h.b16 %v334
      %v509 = vunpack.c.l.b16 %v335
      %v510 = vunpack.c.h.b16 %v335
      %v511 = vunpack.c.l.b16 %v336
      %v512 = vunpack.c.h.b16 %v336
      %v513 = vunpack.c.l.b16 %v337
      %v514 = vunpack.c.h.b16 %v337
      %v515 = vunpack.c.l.b16 %v338
      %v516 = vunpack.c.h.b16 %v338
      %v517 = vunpack.c.l.b16 %v339
      %v518 = vunpack.c.h.b16 %v339
      %v519 = vunpack.c.l.b16 %v340
      %v520 = vunpack.c.h.b16 %v340
      %v521 = vunpack.c.l.b16 %v341
      %v522 = vunpack.c.h.b16 %v341
      %v523 = vunpack.c.l.b16 %v342
      %v524 = vunpack.c.h.b16 %v342
      %v525 = vunpack.c.l.b16 %v343
      %v526 = vunpack.c.h.b16 %v343
      %v527 = vunpack.c.l.b16 %v344
      %v528 = vunpack.c.h.b16 %v344
      %v529 = vunpack.c.l.b16 %v345
      %v530 = vunpack.c.h.b16 %v345
      %v531 = vunpack.c.l.b16 %v346
      %v532 = vunpack.c.h.b16 %v346
      %v533 = vunpack.c.l.b16 %v347
      %v534 = vunpack.c.h.b16 %v347
      %v535 = vunpack.c.l.b16 %v348
      %v536 = vunpack.c.h.b16 %v348
      %v537 = vunpack.c.l.b16 %v349
      %v538 = vunpack.c.h.b16 %v349
      %v539 = vunpack.c.l.b16 %v350
      %v540 = vunpack.c.h.b16 %v350
      %v541 = vunpack.c.l.b16 %v351
      %v542 = vunpack.c.h.b16 %v351
      %v543 = vunpack.c.l.b16 %v352
      %v544 = vunpack.c.h.b16 %v352
      %v545 = vunpack.c.l.b16 %v353
      %v546 = vunpack.c.h.b16 %v353
      %v547 = vunpack.c.l.b16 %v354
      %v548 = vunpack.c.h.b16 %v354
      %v549 = vunpack.c.l.b16 %v355
      %v550 = vunpack.c.h.b16 %v355
      %v551 = vunpack.c.l.b16 %v356
      %v552 = vunpack.c.h.b16 %v356
      %v553 = vunpack.c.l.b16 %v357
      %v554 = vunpack.c.h.b16 %v357
      %v555 = vunpack.c.l.b16 %v358
      %v556 = vunpack.c.h.b16 %v358
      %v557 = vpack.c.b16 %v431, %v429
      %v558 = vpack.c.b16 %v432, %v430
      %v559 = vpack.c.b16 %v435, %v433
      %v560 = vpack.c.b16 %v436, %v434
      %v561 = vpack.c.b16 %v439, %v437
      %v562 = vpack.c.b16 %v440, %v438
      %v563 = vpack.c.b16 %v443, %v441
      %v564 = vpack.c.b16 %v444, %v442
      %v565 = vpack.c.b16 %v447, %v445
      %v566 = vpack.c.b16 %v448, %v446
      %v567 = vpack.c.b16 %v451, %v449
      %v568 = vpack.c.b16 %v452, %v450
      %v569 = vpack.c.b16 %v455, %v453
      %v570 = vpack.c.b16 %v456, %v454
      %v571 = vpack.c.b16 %v459, %v457
      %v572 = vpack.c.b16 %v460, %v458
      %v573 = vpack.c.b16 %v463, %v461
      %v574 = vpack.c.b16 %v464, %v462
      %v575 = vpack.c.b16 %v467, %v465
      %v576 = vpack.c.b16 %v468, %v466
      %v577 = vpack.c.b16 %v471, %v469
      %v578 = vpack.c.b16 %v472, %v470
      %v579 = vpack.c.b16 %v475, %v473
      %v580 = vpack.c.b16 %v476, %v474
      %v581 = vpack.c.b16 %v479, %v477
      %v582 = vpack.c.b16 %v480, %v478
      %v583 = vpack.c.b16 %v483, %v481
      %v584 = vpack.c.b16 %v484, %v482
      %v585 = vpack.c.b16 %v487, %v485
      %v586 = vpack.c.b16 %v488, %v486
      %v587 = vpack.c.b16 %v491, %v489
      %v588 = vpack.c.b16 %v492, %v490
      %v589 = vpack.c.b16 %v495, %v493
      %v590 = vpack.c.b16 %v496, %v494
      %v591 = vpack.c.b16 %v499, %v497
      %v592 = vpack.c.b16 %v500, %v498
      %v593 = vpack.c.b16 %v503, %v501
      %v594 = vpack.c.b16 %v504, %v502
      %v595 = vpack.c.b16 %v507, %v505
      %v596 = vpack.c.b16 %v508, %v506
      %v597 = vpack.c.b16 %v511, %v509
      %v598 = vpack.c.b16 %v512, %v510
      %v599 = vpack.c.b16 %v515, %v513
      %v600 = vpack.c.b16 %v516, %v514
      %v601 = vpack.c.b16 %v519, %v517
      %v602 = vpack.c.b16 %v520, %v518
      %v603 = vpack.c.b16 %v523, %v521
      %v604 = vpack.c.b16 %v524, %v522
      %v605 = vpack.c.b16 %v527, %v525
      %v606 = vpack.c.b16 %v528, %v526
      %v607 = vpack.c.b16 %v531, %v529
      %v608 = vpack.c.b16 %v532, %v530
      %v609 = vpack.c.b16 %v535, %v533
      %v610 = vpack.c.b16 %v536, %v534
      %v611 = vpack.c.b16 %v539, %v537
      %v612 = vpack.c.b16 %v540, %v538
      %v613 = vpack.c.b16 %v543, %v541
      %v614 = vpack.c.b16 %v544, %v542
      %v615 = vpack.c.b16 %v547, %v545
      %v616 = vpack.c.b16 %v548, %v546
      %v617 = vpack.c.b16 %v551, %v549
      %v618 = vpack.c.b16 %v552, %v550
      %v619 = vpack.c.b16 %v555, %v553
      %v620 = vpack.c.b16 %v556, %v554
      %vm653 = vcmask 523264
      %v655 = vsel %vm653, %v363, 0
      %v658 = vsel %vm653, %v558, 0
      %v661 = vsel %vm653, %v560, 0
      %v664 = vsel %vm653, %v562, 0
      %v667 = vsel %vm653, %v564, 0
      %v670 = vsel %vm653, %v566, 0
      %v673 = vsel %vm653, %v568, 0
      %v676 = vsel %vm653, %v570, 0
      %v679 = vsel %vm653, %v572, 0
      %v682 = vsel %vm653, %v574, 0
      %v685 = vsel %vm653, %v576, 0
      %v688 = vsel %vm653, %v578, 0
      %v691 = vsel %vm653, %v580, 0
      %v694 = vsel %vm653, %v582, 0
      %v697 = vsel %vm653, %v584, 0
      %v700 = vsel %vm653, %v586, 0
      %v703 = vsel %vm653, %v588, 0
      %v706 = vsel %vm653, %v590, 0
      %v709 = vsel %vm653, %v592, 0
      %v712 = vsel %vm653, %v594, 0
      %v715 = vsel %vm653, %v596, 0
      %v718 = vsel %vm653, %v598, 0
      %v721 = vsel %vm653, %v600, 0
      %v724 = vsel %vm653, %v602, 0
      %v727 = vsel %vm653, %v604, 0
      %v730 = vsel %vm653, %v606, 0
      %v733 = vsel %vm653, %v608, 0
      %v736 = vsel %vm653, %v610, 0
      %v739 = vsel %vm653, %v612, 0
      %v742 = vsel %vm653, %v614, 0
      %v745 = vsel %vm653, %v616, 0
      %v748 = vsel %vm653, %v618, 0
      %v751 = vsel %vm653, %v620, 0
      %753 = vmatprep.subr.bf16.mxu0 %v679
      %754 = vmatpush1.bf16.xpose.msra.mxu0 %v571
      %755 = vmatprep.subr.bf16.mxu0 %v676
      %756 = vmatpush1.bf16.xpose.msra.mxu0 %v569
      %757 = vmatprep.subr.bf16.mxu0 %v673
      %758 = vmatpush1.bf16.xpose.msra.mxu0 %v567
      %759 = vmatprep.subr.bf16.mxu0 %v670
      %760 = vmatpush1.bf16.xpose.msra.mxu0 %v565
      %761 = vmatprep.subr.bf16.mxu0 %v667
      %762 = vmatpush1.bf16.xpose.msra.mxu0 %v563
      %763 = vmatprep.subr.bf16.mxu0 %v664
      %764 = vmatpush1.bf16.xpose.msra.mxu0 %v561
      %765 = vmatprep.subr.bf16.mxu0 %v661
      %766 = vmatpush1.bf16.xpose.msra.mxu0 %v559
      %767 = vmatprep.subr.bf16.mxu0 %v658
      %768 = vmatpush1.bf16.xpose.msra.mxu0 %v557
      %769 = vmatprep.subr.bf16.mxu0 %v703
      %770 = vmatpush2.bf16.xpose.msra.mxu0 %v587
      %771 = vmatprep.subr.bf16.mxu0 %v700
      %772 = vmatpush2.bf16.xpose.msra.mxu0 %v585
      %773 = vmatprep.subr.bf16.mxu0 %v697
      %774 = vmatpush2.bf16.xpose.msra.mxu0 %v583
      %775 = vmatprep.subr.bf16.mxu0 %v694
      %776 = vmatpush2.bf16.xpose.msra.mxu0 %v581
      %777 = vmatprep.subr.bf16.mxu0 %v691
      %778 = vmatpush2.bf16.xpose.msra.mxu0 %v579
      %779 = vmatprep.subr.bf16.mxu0 %v688
      %780 = vmatpush2.bf16.xpose.msra.mxu0 %v577
      %781 = vmatprep.subr.bf16.mxu0 %v685
      %782 = vmatpush2.bf16.xpose.msra.mxu0 %v575
      %783 = vmatprep.subr.bf16.mxu0 %v682
      %784 = vmatpush2.bf16.xpose.msra.mxu0 %v573
      %785 = vmatprep.mubr.bf16.mxu0 %v655
      %786 = vmatmul.mubr.bf16.gmra.mxu0 %v362
      %v787 = vpop.f32.mrf.mxu0
      %v788 = vadd.f32 0.0, %v787
      %v789 = vpop.f32.mrf.mxu0
      %v790 = vadd.f32 0.0, %v789
      %v791 = vpop.f32.mrf.mxu0
      %v792 = vpop.f32.mrf.mxu0
      %793 = vdwg.mxu0
      %794 = vmatprep.subr.bf16.mxu0 %v727
      %795 = vmatpush1.bf16.xpose.msra.mxu0 %v603
      %796 = vmatprep.subr.bf16.mxu0 %v724
      %797 = vmatpush1.bf16.xpose.msra.mxu0 %v601
      %798 = vmatprep.subr.bf16.mxu0 %v721
      %799 = vmatpush1.bf16.xpose.msra.mxu0 %v599
      %800 = vmatprep.subr.bf16.mxu0 %v718
      %801 = vmatpush1.bf16.xpose.msra.mxu0 %v597
      %802 = vmatprep.subr.bf16.mxu0 %v715
      %803 = vmatpush1.bf16.xpose.msra.mxu0 %v595
      %804 = vmatprep.subr.bf16.mxu0 %v712
      %805 = vmatpush1.bf16.xpose.msra.mxu0 %v593
      %806 = vmatprep.subr.bf16.mxu0 %v709
      %807 = vmatpush1.bf16.xpose.msra.mxu0 %v591
      %808 = vmatprep.subr.bf16.mxu0 %v706
      %809 = vmatpush1.bf16.xpose.msra.mxu0 %v589
      %810 = vmatprep.subr.bf16.mxu0 %v751
      %811 = vmatpush2.bf16.xpose.msra.mxu0 %v619
      %812 = vmatprep.subr.bf16.mxu0 %v748
      %813 = vmatpush2.bf16.xpose.msra.mxu0 %v617
      %814 = vmatprep.subr.bf16.mxu0 %v745
      %815 = vmatpush2.bf16.xpose.msra.mxu0 %v615
      %816 = vmatprep.subr.bf16.mxu0 %v742
      %817 = vmatpush2.bf16.xpose.msra.mxu0 %v613
      %818 = vmatprep.subr.bf16.mxu0 %v739
      %819 = vmatpush2.bf16.xpose.msra.mxu0 %v611
      %820 = vmatprep.subr.bf16.mxu0 %v736
      %821 = vmatpush2.bf16.xpose.msra.mxu0 %v609
      %822 = vmatprep.subr.bf16.mxu0 %v733
      %823 = vmatpush2.bf16.xpose.msra.mxu0 %v607
      %824 = vmatprep.subr.bf16.mxu0 %v730
      %825 = vmatpush2.bf16.xpose.msra.mxu0 %v605
      %826 = vmatprep.mubr.bf16.mxu0 %v655
      %827 = vmatmul.mubr.bf16.gmra.mxu0 %v362
      %v828 = vpop.f32.mrf.mxu0
      %v829 = vadd.f32 0.0, %v828
      %v830 = vpop.f32.mrf.mxu0
      %v831 = vadd.f32 0.0, %v830
      %v832 = vpop.f32.mrf.mxu0
      %v833 = vpop.f32.mrf.mxu0
      %834 = vdwg.mxu0
      %s835 = smul.u32 %s21, 512
      %v836 = vlaneseq
      %v837 = vand.u32 %v836, 127
      %v838 = vadd.s32 %v837, 128
      %v839 = vadd.s32 %v837, 256
      %v840 = vadd.s32 %v837, 384
      %v841 = vstv %s835
      %v842 = vadd.s32 %v841, %v837
      %v843 = vadd.s32 %v841, %v838
      %v844 = vadd.s32 %v841, %v839
      %v845 = vadd.s32 %v841, %v840
      %vm846 = vcmp.lt.s32.totalorder %v842, 500
      %vm847 = vcmp.lt.s32.totalorder %v843, 500
      %vm848 = vcmp.lt.s32.totalorder %v844, 500
      %vm849 = vcmp.lt.s32.totalorder %v845, 500
      %v850 = vsel %vm846, %v788, -10000.0
      %v851 = vsel %vm847, %v790, -10000.0
      %v852 = vsel %vm848, %v829, -10000.0
      %v853 = vsel %vm849, %v831, -10000.0
      %v854 = vld [vmem:[%s252] sm:$0xff]
      %v855 = vmax.f32 %v850, %v851
      %v856 = vmax.f32 %v852, %v853
      %v857 = vmax.f32 %v855, %v856
      %858 = vmax.xlane.f32.xlu0 %v857
      %v859 = vpop.xlane.xlu0 %858
      %860 = vset.pattern.permute.xlu0 0
      %861 = vperm.xlu0 %860, %v854
      %v862 = vpop.permute.xlu0 %861
      %vm863 = vcmp.eq.s32.totalorder %v842, %v862
      %vm864 = vcmp.eq.s32.totalorder %v843, %v862
      %vm865 = vcmp.eq.s32.totalorder %v844, %v862
      %vm866 = vcmp.eq.s32.totalorder %v845, %v862
      %v867 = vsel %vm863, %v850, 0.0
      %v868 = vsel %vm864, %v851, 0.0
      %v869 = vsel %vm865, %v852, 0.0
      %v870 = vsel %vm866, %v853, 0.0
      %v871 = vadd.f32 %v867, %v868
      %v872 = vadd.f32 %v871, %v869
      %v873 = vadd.f32 %v872, %v870
      %874 = vadd.xlane.f32.xlu0 %v873
      %v875 = vpop.xlane.xlu0 %874
      %v876 = vld [vmem:[#allocation3] sm:$0xff]
      %v877 = vmul.f32 %v859, 30.0
      %v878 = vmax.f32 %v876, %v877
      %v879 = vmul.f32 %v850, 30.0
      %v880 = vmul.f32 %v851, 30.0
      %v881 = vmul.f32 %v852, 30.0
      %v882 = vmul.f32 %v853, 30.0
      %884 = vset.pattern.permute.xlu0 0
      %885 = vperm.xlu0 %884, %v878
      %v886 = vpop.permute.xlu0 %885
      %v888 = vsub.f32 %v879, %v886
      %v889 = vsub.f32 %v880, %v886
      %v890 = vsub.f32 %v881, %v886
      %v891 = vsub.f32 %v882, %v886
      %v892 = vmul.f32 %v888, 1.442695
      %v893 = vpow.pop %v892
      %v894 = vmul.f32 %v889, 1.442695
      %v895 = vpow.pop %v894
      %v896 = vmul.f32 %v890, 1.442695
      %v897 = vpow.pop %v896
      %v898 = vmul.f32 %v891, 1.442695
      %v899 = vpow.pop %v898
      %v900 = vadd.f32 %v893, %v895
      %v901 = vadd.f32 %v900, %v897
      %v902 = vadd.f32 %v901, %v899
      %903 = vadd.xlane.f32.xlu0 %v902
      %v904 = vpop.xlane.xlu0 %903
      %vm905 = vcmp.ge.s32.totalorder %v854, %v841
      %s906 = sadd.s32 %s835, 512
      %v907 = vstv %s906
      %vm908 = vcmp.lt.s32.totalorder %v854, %v907
      %vm909 = vmand %vm905, %vm908
      %v910 = vmul.f32 %v875, %v875
      %v911 = vsub.f32 1.0, %v910
      %v912 = vmax.f32 %v911, 0.0
      %v913 = vrsqrt.pop %v912
      %v914 = vmul.f32 %v912, %v913
      %vm915 = vcmp.eq.f32.partialorder %v912, inf
      %v916 = vsel %vm915, %v912, %v914
      %vm917 = vcmp.eq.f32.partialorder %v912, 0.0
      %v918 = vand.u32 %v912, 2147483648
      %v919 = vsel %vm917, %v918, %v916
      %v920 = vmul.f32 %v875, 0.9800666
      %v921 = vmul.f32 %v919, 0.19866933
      %v922 = vsub.f32 %v920, %v921
      %vm923 = vcmp.gt.f32.partialorder %v875, -0.9800666
      %v924 = vsub.f32 %v875, 0.039733864
      %v925 = vsel %vm923, %v922, %v924
      %v926 = vmul.f32 %v925, 30.0
      %v927 = vsub.f32 %v926, %v878
      %v928 = vmul.f32 %v927, 1.442695
      %v929 = vpow.pop %v928
      %v930 = vmul.f32 %v875, 30.0
      %v931 = vsub.f32 %v930, %v878
      %v932 = vmul.f32 %v931, 1.442695
      %v933 = vpow.pop %v932
      %v934 = vsub.f32 %v929, %v933
      %v935 = vsel %vm909, %v934, 0.0
      %v936 = vld [vmem:[#allocation4] sm:$0xff]
      %v937 = vsub.f32 %v876, %v878
      %v938 = vmul.f32 %v937, 1.442695
      %v939 = vpow.pop %v938
      %v940 = vmul.f32 %v936, %v939
      %v941 = vadd.f32 %v940, %v904
      %v942 = vadd.f32 %v941, %v935
      %vm943 = vcmask 7168
      %944 = vst.msk [vmem:[#allocation4] sm:$0xff] %vm943, %v942
      %945 = vst.msk [vmem:[#allocation3] sm:$0xff] %vm943, %v878
      %v946 = vld [vmem:[#allocation5] sm:$0xff]
      %v947 = vadd.f32 %v946, %v875
      %948 = vst.msk [vmem:[#allocation5] sm:$0xff] %vm943, %v947
      // Predicated region
      $region37: #{arc_margin_softmax_loss.1} parent=31 // pred_check
        %p949 = pneg %p261
      $region38: #{arc_margin_softmax_loss.1} parent=31 // pred_check_branch
        %951 = sbr.rel (%p949) target = $region40
      $region39: #{arc_margin_softmax_loss.1} parent=31 // pred_region
        %v952 = vld [vmem:[#allocation5] sm:$0xff]
        %v953 = vmul.f32 %v952, %v952
        %v954 = vsub.f32 1.0, %v953
        %v955 = vmax.f32 %v954, 0.0
        %v956 = vrsqrt.pop %v955
        %v957 = vmul.f32 %v955, %v956
        %vm958 = vcmp.eq.f32.partialorder %v955, inf
        %v959 = vsel %vm958, %v955, %v957
        %vm960 = vcmp.eq.f32.partialorder %v955, 0.0
        %v961 = vand.u32 %v955, 2147483648
        %v962 = vsel %vm960, %v961, %v959
        %v963 = vmul.f32 %v952, 0.9800666
        %v964 = vmul.f32 %v962, 0.19866933
        %v965 = vsub.f32 %v963, %v964
        %vm966 = vcmp.gt.f32.partialorder %v952, -0.9800666
        %v967 = vsub.f32 %v952, 0.039733864
        %v968 = vsel %vm966, %v965, %v967
        %v969 = vld [vmem:[#allocation3] sm:$0xff]
        %v970 = vld [vmem:[#allocation4] sm:$0xff]
        %v971 = vlog2.pop %v970
        %v972 = vmul.f32 %v971, 0.6931472
        %v973 = vadd.f32 %v969, %v972
        %v974 = vmul.f32 %v968, 30.0
        %v975 = vsub.f32 %v973, %v974
        %v976 = vmul.f32 %v952, 30.0
        %vm977 = vcmp.ge.f32.partialorder %v976, %v969
        %v978 = vsel %vm977, 1, 0
        %v979 = vcvt.s32.f32 %v978
        %980 = vst.msk [vmem:[%s256] sm:$0xff] %vm943, %v975
        %981 = vst.msk [vmem:[%s260] sm:$0xff] %vm943, %v979
      $region40: #{arc_margin_softmax_loss.1} parent=31 // pred_fallthru
        _
      %p982 = scmp.lt.s32.totalorder %s20, 1
      %s983 = scalar_select %p982, %s20, 1
      %s984 = smul.addr %s983, 8
      %s985 = scalar_lea.vmem %s3, %s984
      %p986 = scmp.lt.s32.totalorder %s20, 1
      %s987 = scalar_select %p986, %s20, 1
      %s988 = smul.addr %s987, 8
      %s989 = scalar_lea.vmem %s4, %s988
      // Predicated region
      $region41: #{arc_margin_softmax_loss.1} parent=31 // pred_check
        %p990 = pneg %p124
      $region42: #{arc_margin_softmax_loss.1} parent=31 // pred_check_branch
        %992 = sbr.rel (%p990) target = $region44
      $region43: #{arc_margin_softmax_loss.1} parent=31 // pred_region
        _
      $region44: #{arc_margin_softmax_loss.1} parent=31 // pred_fallthru
        _
      // Predicated region
      $region45: #{arc_margin_softmax_loss.1} parent=31 // pred_check
        %p993 = pneg %p150
      $region46: #{arc_margin_softmax_loss.1} parent=31 // pred_check_branch
        %995 = sbr.rel (%p993) target = $region48
      $region47: #{arc_margin_softmax_loss.1} parent=31 // pred_region
        _
      $region48: #{arc_margin_softmax_loss.1} parent=31 // pred_fallthru
        _
    $region32: #{arc_margin_softmax_loss.1} parent=5 // pred_fallthru
      _
    %p996 = scmp.le.s32.totalorder 2, %s11
    // Predicated region
    $region49: #{arc_margin_softmax_loss.1} parent=5 // pred_check
      %p997 = pneg %p996
    $region50: #{arc_margin_softmax_loss.1} parent=5 // pred_check_branch
      %999 = sbr.rel (%p997) target = $region52
    $region51: #{arc_margin_softmax_loss.1} parent=5 // pred_region
      %s1000 = ssub.s32 %s11, 2
      // Predicated region
      $region53: #{arc_margin_softmax_loss.1} parent=51 // pred_check
        %p1001 = pneg %p130
      $region54: #{arc_margin_softmax_loss.1} parent=51 // pred_check_branch
        %1003 = sbr.rel (%p1001) target = $region56
      $region55: #{arc_margin_softmax_loss.1} parent=51 // pred_region
        %p1004 = scmp.lt.s32.totalorder %s22, 1
        %s1005 = scalar_select %p1004, %s22, 1
        %s1006 = smul.addr %s1005, 8
        %s1007 = scalar_lea.vmem %s3, %s1006
      $region56: #{arc_margin_softmax_loss.1} parent=51 // pred_fallthru
        _
      // Predicated region
      $region57: #{arc_margin_softmax_loss.1} parent=51 // pred_check
        %p1008 = pneg %p156
      $region58: #{arc_margin_softmax_loss.1} parent=51 // pred_check_branch
        %1010 = sbr.rel (%p1008) target = $region60
      $region59: #{arc_margin_softmax_loss.1} parent=51 // pred_region
        %p1011 = scmp.lt.s32.totalorder %s22, 1
        %s1012 = scalar_select %p1011, %s22, 1
        %s1013 = smul.addr %s1012, 8
        %s1014 = scalar_lea.vmem %s4, %s1013
      $region60: #{arc_margin_softmax_loss.1} parent=51 // pred_fallthru
        _
    $region52: #{arc_margin_softmax_loss.1} parent=5 // pred_fallthru
      _
  $region6: #{arc_margin_softmax_loss.1} parent=0 // loop_footer
    %s15 = sadd.s32 1, %s11
  $region7: #{arc_margin_softmax_loss.1} parent=0 // loop_footer_branch
    %10 = sbr.rel target = $region3
  $region8: #{arc_margin_softmax_loss.1} parent=0 // loop_exit
    _

</llo_original>
